<compile_context>
chip_gen: v5e
topology: v5e:2x2
jax: 0.10.0
libtpu: 0.0.40
codegen_flags: <defaults>
</compile_context>

<pallas_src>
import functools
import math

import jax
import jax.numpy as jnp
from jax.experimental import pallas as pl
from jax.experimental.pallas import tpu as pltpu


_LANES = 1024                 # lane-dense slab width (8 * 128): unmasked vst
_MAX_FUSE = 8                 # max tensors fused per pallas_call (VMEM guard)
_SMALL_BYTES = 256 * 1024     # below this, plain XLA fusion is faster


def _cdiv(a, b):
    return -(-a // b)


def _vmem_caps():
    """(tile-byte budget, vmem_limit cap) derived from physical VMEM size."""
    try:
        phys = int(pltpu.get_tpu_info().vmem_capacity_bytes)
    except Exception:
        phys = 64 * 1024 * 1024                    # conservative: assume v7x
    if phys >= 96 * 1024 * 1024:                   # v5e / v6e: 128 MiB VMEM
        return 56 * 1024 * 1024, 96 * 1024 * 1024
    return 24 * 1024 * 1024, 32 * 1024 * 1024      # v7x: 64 MiB VMEM


def _make_add_kernel(num_inputs, acc_dtype):
    """Fused elementwise sum of `num_inputs` same-shaped VMEM tiles."""

    def kernel(*refs):
        o_ref = refs[num_inputs]
        acc = refs[0][...].astype(acc_dtype)
        for i in range(1, num_inputs):
            acc = acc + refs[i][...].astype(acc_dtype)
        o_ref[...] = acc.astype(o_ref.dtype)

    return kernel


def _pallas_sum_2d(xs2d, out_dtype, acc_dtype, pbytes_per_input):
    """Fused sum of same-shaped (rows, _LANES) slabs via one pallas_call."""
    K = len(xs2d)
    rows = xs2d[0].shape[0]

    itemsizes = [jnp.dtype(x.dtype).itemsize for x in xs2d]
    out_itemsize = jnp.dtype(out_dtype).itemsize
    min_itemsize = min(itemsizes + [out_itemsize])
    max_itemsize = max(itemsizes + [out_itemsize])
    sub = {1: 32, 2: 16}.get(min_itemsize, 8)      # dtype-aware sublane multiple

    budget, limit_cap = _vmem_caps()
    bytes_per_row = _LANES * (sum(itemsizes) + out_itemsize)

    # Byte-targeted tile: ~2 MiB per (largest) input tile, bounded by the VMEM
    # budget for the double-buffered (K inputs + 1 output) working set.
    target_rows = max(sub, ((2 << 20) // (_LANES * max_itemsize)) // sub * sub)
    max_rows = max(sub, (budget // (2 * bytes_per_row)) // sub * sub)
    tr_cap = min(target_rows, max_rows)

    # Minimum number of row blocks: >=2 above ~1 MiB (v7x has 2 TensorCores),
    # 4-8 above a few MiB so read-DMA / compute / writeback overlap.
    if pbytes_per_input >= 16 * 1024 * 1024:
        min_blocks = 8
    elif pbytes_per_input >= 4 * 1024 * 1024:
        min_blocks = 4
    elif pbytes_per_input >= 1024 * 1024:
        min_blocks = 2
    else:
        min_blocks = 1

    if min_blocks == 1 and rows <= tr_cap:
        tr = rows                                   # single full-extent block
    else:
        rows_per_split = _cdiv(rows, min_blocks)
        tr = min(tr_cap, max(sub, (rows_per_split // sub) * sub))
        tr = min(tr, rows)
    grid_n = _cdiv(rows, tr)

    # Exact double-buffered footprint; limit sits just above it (gen-capped).
    footprint = 2 * tr * bytes_per_row
    vmem_limit = max(min(limit_cap, footprint + (4 << 20)), footprint + (1 << 20))

    block = pl.BlockSpec((tr, _LANES), lambda i: (i, 0))
    return pl.pallas_call(
        _make_add_kernel(K, acc_dtype),
        out_shape=jax.ShapeDtypeStruct((rows, _LANES), out_dtype),
        grid=(grid_n,),
        in_specs=[block] * K,
        out_specs=block,
        compiler_params=pltpu.CompilerParams(
            dimension_semantics=("parallel",),
            vmem_limit_bytes=int(vmem_limit),
        ),
    )(*xs2d)


def add_list(xs):
    """Elementwise sum of a list of same-shaped arrays (ultralytics Add)."""
    xs = list(xs)
    K = len(xs)
    if K == 0:
        raise ValueError("Add expects at least one input tensor")
    shape = xs[0].shape
    for x in xs:
        if x.shape != shape:
            raise ValueError("all inputs must share the same shape")

    out_dtype = jnp.result_type(*xs)
    # TODO(synk): torch.sum promotes integral inputs to int64; we keep the
    # promoted input dtype (Add is only used on float activations).
    if jnp.issubdtype(out_dtype, jnp.floating):
        acc_dtype = jnp.promote_types(out_dtype, jnp.float32)
    else:
        acc_dtype = out_dtype

    total = math.prod(shape) if shape else 1
    total_bytes = total * jnp.dtype(out_dtype).itemsize

    # Small-tensor fast path: pallas_call launch overhead dominates; one fused
    # XLA elementwise loop is already at the HBM roofline for this op.
    if total_bytes < _SMALL_BYTES:
        return functools.reduce(jnp.add, xs).astype(out_dtype)

    # Very large K: tree-sum in chunks so (2K+2) double-buffered tiles never
    # exceed the VMEM budget and per-input tiles stay bandwidth-sized.
    if K > _MAX_FUSE:
        parts = [add_list(xs[i:i + _MAX_FUSE]) for i in range(0, K, _MAX_FUSE)]
        return add_list(parts)

    itemsize_max = max(jnp.dtype(x.dtype).itemsize for x in xs)
    rows = total // _LANES
    prefix = rows * _LANES
    tail = total - prefix

    flats = [x.reshape(-1) for x in xs]             # free: contiguous reshape
    if tail == 0:
        xs2d = [f.reshape(rows, _LANES) for f in flats]   # free reshape
    else:
        # Ragged numel: Pallas on the lane-aligned prefix, tiny tail via jnp.
        xs2d = [f[:prefix].reshape(rows, _LANES) for f in flats]

    out2d = _pallas_sum_2d(xs2d, out_dtype, acc_dtype, prefix * itemsize_max)

    if tail == 0:
        return out2d.reshape(shape)
    tail_sum = functools.reduce(jnp.add, [f[prefix:] for f in flats])
    return jnp.concatenate([out2d.reshape(-1), tail_sum.astype(out_dtype)]).reshape(shape)


def _reference(xs):
    return jnp.sum(jnp.stack(xs, axis=0), axis=0)


if __name__ == "__main__":
    key = jax.random.PRNGKey(0)

    # 1) Module-consistent small shape (NCHW) — exercises the XLA fast path.
    k = jax.random.split(key, 3)
    shape_small = (2, 4, 16, 16)
    xs_small = [jax.random.normal(k[i], shape_small, dtype=jnp.float32) for i in range(3)]
    out_small = jax.block_until_ready(add_list(xs_small))
    ref_small = _reference(xs_small)
    assert out_small.shape == ref_small.shape and out_small.dtype == ref_small.dtype
    assert jnp.allclose(out_small, ref_small, atol=1e-6, rtol=1e-6)

    # 2) Pallas path, lane-divisible numel, grid split across >=2 blocks.
    k = jax.random.split(jax.random.PRNGKey(1), 3)
    shape_med = (2, 32, 64, 64)           # 262144 elems = 1 MiB f32
    xs_med = [jax.random.normal(k[i], shape_med, dtype=jnp.float32) for i in range(3)]
    out_med = jax.block_until_ready(add_list(xs_med))
    ref_med = _reference(xs_med)
    assert out_med.shape == ref_med.shape and out_med.dtype == ref_med.dtype
    assert jnp.allclose(out_med, ref_med, atol=1e-5, rtol=1e-5)

    # 3) Pallas path, ragged numel (not a multiple of 1024) -> prefix + tail.
    k = jax.random.split(jax.random.PRNGKey(2), 3)
    shape_rag = (3, 5, 67, 67)            # 67335 elems
    xs_rag = [jax.random.normal(k[i], shape_rag, dtype=jnp.float32) for i in range(3)]
    out_rag = jax.block_until_ready(add_list(xs_rag))
    ref_rag = _reference(xs_rag)
    assert out_rag.shape == ref_rag.shape and out_rag.dtype == ref_rag.dtype
    assert jnp.allclose(out_rag, ref_rag, atol=1e-5, rtol=1e-5)

    # 4) Pallas path, bf16 inputs (f32 accumulation, cast once on store).
    k = jax.random.split(jax.random.PRNGKey(3), 2)
    xs_bf = [jax.random.normal(k[i], shape_med, dtype=jnp.bfloat16) for i in range(2)]
    out_bf = jax.block_until_ready(add_list(xs_bf))
    ref_bf = _reference(xs_bf)
    assert out_bf.shape == ref_bf.shape and out_bf.dtype == ref_bf.dtype
    assert jnp.allclose(out_bf.astype(jnp.float32), ref_bf.astype(jnp.float32),
                        atol=5e-2, rtol=5e-2)

    print("KERNEL_OK")
</pallas_src>

<mosaic_0001>
module attributes {stable_mosaic.version = 11 : i64} {
  func.func @kernel(%arg0: i32, %arg1: memref<128x1024xf32, #tpu.memory_space<vmem>>, %arg2: memref<128x1024xf32, #tpu.memory_space<vmem>>, %arg3: memref<128x1024xf32, #tpu.memory_space<vmem>>, %arg4: memref<128x1024xf32, #tpu.memory_space<vmem>>) attributes {dimension_semantics = [#tpu.dimension_semantics<parallel>], iteration_bounds = array<i64: 2>, scalar_prefetch = 0 : i64, scratch_operands = 0 : i64, tpu.core_type = #tpu.core_type<tc>, window_params = [{transform_indices = @transform_0, window_bounds = array<i64: 128, 1024>}, {transform_indices = @transform_1, window_bounds = array<i64: 128, 1024>}, {transform_indices = @transform_2, window_bounds = array<i64: 128, 1024>}, {transform_indices = @transform_3, window_bounds = array<i64: 128, 1024>}]} {
    %c0 = arith.constant 0 : index
    %c0_0 = arith.constant 0 : index
    %0 = vector.load %arg1[%c0, %c0_0] : memref<128x1024xf32, #tpu.memory_space<vmem>>, vector<128x1024xf32>
    %c0_1 = arith.constant 0 : index
    %c0_2 = arith.constant 0 : index
    %1 = vector.load %arg2[%c0_1, %c0_2] : memref<128x1024xf32, #tpu.memory_space<vmem>>, vector<128x1024xf32>
    %2 = arith.addf %0, %1 : vector<128x1024xf32>
    %c0_3 = arith.constant 0 : index
    %c0_4 = arith.constant 0 : index
    %3 = vector.load %arg3[%c0_3, %c0_4] : memref<128x1024xf32, #tpu.memory_space<vmem>>, vector<128x1024xf32>
    %4 = arith.addf %2, %3 : vector<128x1024xf32>
    %c0_5 = arith.constant 0 : index
    %c0_6 = arith.constant 0 : index
    %5 = vector.load %arg4[%c0_5, %c0_6] : memref<128x1024xf32, #tpu.memory_space<vmem>>, vector<128x1024xf32>
    tpu.vector_store %arg4[%c0_5, %c0_6], %4 {strides = array<i32>} : memref<128x1024xf32, #tpu.memory_space<vmem>>, vector<128x1024xf32>,
    return
  }
  func.func @transform_0(%arg0: i32) -> (i32, i32) {
    %c0_i32 = arith.constant 0 : i32
    %c0_i32_0 = arith.constant 0 : i32
    return %arg0, %c0_i32 : i32, i32
  }
  func.func @transform_1(%arg0: i32) -> (i32, i32) {
    %c0_i32 = arith.constant 0 : i32
    %c0_i32_0 = arith.constant 0 : i32
    return %arg0, %c0_i32 : i32, i32
  }
  func.func @transform_2(%arg0: i32) -> (i32, i32) {
    %c0_i32 = arith.constant 0 : i32
    %c0_i32_0 = arith.constant 0 : i32
    return %arg0, %c0_i32 : i32, i32
  }
  func.func @transform_3(%arg0: i32) -> (i32, i32) {
    %c0_i32 = arith.constant 0 : i32
    %c0_i32_0 = arith.constant 0 : i32
    return %arg0, %c0_i32 : i32, i32
  }
}

</mosaic_0001>

<llo_original>
// kernel: tpu_custom_call.1
$region0: #{tpu_custom_call.1}
  #allocation0 [shape = 'u32[]', space=smem, size = 0x4, offset = 0x4, fixed_abs, tag = 'smem constant byte address 0x4 - core index']
  #allocation1 [shape = 'u32[72,128]{1,0:T(1,128)}', space=vmem, size = 0x9000, scoped, tag = 'internal scratch']
  %s0 = inlined_call_operand.hbm [shape: f32[256,1024], index: 0, kind: input, shape index: {}]
  %s1 = inlined_call_operand.hbm [shape: f32[256,1024], index: 1, kind: input, shape index: {}]
  %s2 = inlined_call_operand.hbm [shape: f32[256,1024], index: 2, kind: input, shape index: {}]
  %s3 = inlined_call_operand.hbm [shape: f32[256,1024], index: 3, kind: output, shape index: {}]
  %s4 = sld [smem:[#allocation0]]
  $region57: #{tpu_custom_call.1} parent=0
    _
  %s6 = ssub.s32 1, %s4
  %s7 = scalar_select 0, %s6, %s4
  $region1: #{tpu_custom_call.1} parent=0
    #allocation2 [shape = 'u8[1048576]{0}', space=vmem, size = 0x100000, scoped, tag = 'input window, operand 0']
    #allocation3 [shape = 's32[2]{0}', space=sflag, size = 0x8, scoped, tag = 'scoped memory for tpu_custom_call.1']
    #allocation4 [shape = 's32[2]{0}', space=sflag, size = 0x8, scoped, tag = 'scoped memory for tpu_custom_call.1']
    #allocation5 [shape = 'u8[1048576]{0}', space=vmem, size = 0x100000, scoped, tag = 'input window, operand 1']
    #allocation6 [shape = 's32[2]{0}', space=sflag, size = 0x8, scoped, tag = 'scoped memory for tpu_custom_call.1']
    #allocation7 [shape = 'u8[1048576]{0}', space=vmem, size = 0x100000, scoped, tag = 'input window, operand 2']
    #allocation8 [shape = 'u8[1048576]{0}', space=vmem, size = 0x100000, scoped, tag = 'output window, operand 0']
    %8 = vsyncpa [#allocation3], 0
    %s9 = scalar_lea.sflag [#allocation3], 1
    %10 = vsyncpa %s9, 0
    %11 = vsyncpa [#allocation6], 0
    %s12 = scalar_lea.sflag [#allocation6], 1
    %13 = vsyncpa %s12, 0
    %14 = vsyncpa [#allocation4], 0
    %s15 = scalar_lea.sflag [#allocation4], 1
    %16 = vsyncpa %s15, 0
    loop: start=0, step=1, limit=4
    $region2: #{tpu_custom_call.1} parent=1 // loop_pre_header
      _
    $region3: #{tpu_custom_call.1} parent=1 // loop_header
      %s18 = sphi 0, %s22
      %p19 = scmp.ge.s32.totalorder %s18, 4
      %s28 = sphi 0, %s30
      %s31 = sphi 0, %s28
      %s32 = sphi 0, %s31
      %s48 = sphi 0, %s32
      %s54 = sphi 0, %s56
      %s57 = sphi 0, %s54
      %s58 = sphi 0, %s57
      %s74 = sphi 0, %s58
      %s80 = sphi 0, %s82
      %s83 = sphi 0, %s80
      %s84 = sphi 0, %s83
      %s100 = sphi 0, %s84
      %s106 = sphi 0, %s108
      %s109 = sphi 0, %s106
      %s110 = sphi 0, %s109
      %s126 = sphi 0, %s110
    $region4: #{tpu_custom_call.1} parent=1 // loop_header_branch
      %21 = sbr.rel (%p19) target = $region8
    $region5: #{tpu_custom_call.1} parent=1 // loop_body
      %s23 = ssub.s32 %s18, 1
      %s24 = ssub.s32 %s18, 2
      %s25 = sadd.s32 %s18, 1
      %s26 = ssub.s32 %s18, %s25
      %p27 = scmp.eq.s32.totalorder %s26, 0
      %s29 = sadd.s32 %s28, 1
      %s30 = scalar_select %p27, %s28, %s29
      %p33 = pneg %p27
      %p34 = scmp.eq.s32.totalorder %s18, 1
      %p35 = por %p33, %p34
      %p36 = scmp.ne.s32.totalorder %s28, %s31
      %p37 = scmp.eq.s32.totalorder %s18, 0
      %p38 = por %p36, %p37
      %p39 = scmp.ne.s32.totalorder %s28, %s31
      %p40 = scmp.eq.s32.totalorder %s23, 1
      %p41 = por %p39, %p40
      %p42 = scmp.ne.s32.totalorder %s31, %s32
      %p43 = scmp.eq.s32.totalorder %s23, 0
      %p44 = por %p42, %p43
      %p45 = scmp.ne.s32.totalorder %s31, %s32
      %p46 = scmp.eq.s32.totalorder %s24, 1
      %p47 = por %p45, %p46
      %p49 = scmp.ne.s32.totalorder %s32, %s48
      %p50 = scmp.eq.s32.totalorder %s24, 0
      %p51 = por %p49, %p50
      %s52 = ssub.s32 %s18, %s25
      %p53 = scmp.eq.s32.totalorder %s52, 0
      %s55 = sadd.s32 %s54, 1
      %s56 = scalar_select %p53, %s54, %s55
      %p59 = pneg %p53
      %p60 = scmp.eq.s32.totalorder %s18, 1
      %p61 = por %p59, %p60
      %p62 = scmp.ne.s32.totalorder %s54, %s57
      %p63 = scmp.eq.s32.totalorder %s18, 0
      %p64 = por %p62, %p63
      %p65 = scmp.ne.s32.totalorder %s54, %s57
      %p66 = scmp.eq.s32.totalorder %s23, 1
      %p67 = por %p65, %p66
      %p68 = scmp.ne.s32.totalorder %s57, %s58
      %p69 = scmp.eq.s32.totalorder %s23, 0
      %p70 = por %p68, %p69
      %p71 = scmp.ne.s32.totalorder %s57, %s58
      %p72 = scmp.eq.s32.totalorder %s24, 1
      %p73 = por %p71, %p72
      %p75 = scmp.ne.s32.totalorder %s58, %s74
      %p76 = scmp.eq.s32.totalorder %s24, 0
      %p77 = por %p75, %p76
      %s78 = ssub.s32 %s18, %s25
      %p79 = scmp.eq.s32.totalorder %s78, 0
      %s81 = sadd.s32 %s80, 1
      %s82 = scalar_select %p79, %s80, %s81
      %p85 = pneg %p79
      %p86 = scmp.eq.s32.totalorder %s18, 1
      %p87 = por %p85, %p86
      %p88 = scmp.ne.s32.totalorder %s80, %s83
      %p89 = scmp.eq.s32.totalorder %s18, 0
      %p90 = por %p88, %p89
      %p91 = scmp.ne.s32.totalorder %s80, %s83
      %p92 = scmp.eq.s32.totalorder %s23, 1
      %p93 = por %p91, %p92
      %p94 = scmp.ne.s32.totalorder %s83, %s84
      %p95 = scmp.eq.s32.totalorder %s23, 0
      %p96 = por %p94, %p95
      %p97 = scmp.ne.s32.totalorder %s83, %s84
      %p98 = scmp.eq.s32.totalorder %s24, 1
      %p99 = por %p97, %p98
      %p101 = scmp.ne.s32.totalorder %s84, %s100
      %p102 = scmp.eq.s32.totalorder %s24, 0
      %p103 = por %p101, %p102
      %s104 = ssub.s32 %s18, %s25
      %p105 = scmp.eq.s32.totalorder %s104, 0
      %s107 = sadd.s32 %s106, 1
      %s108 = scalar_select %p105, %s106, %s107
      %p111 = pneg %p105
      %p112 = scmp.eq.s32.totalorder %s18, 1
      %p113 = por %p111, %p112
      %p114 = scmp.ne.s32.totalorder %s106, %s109
      %p115 = scmp.eq.s32.totalorder %s18, 0
      %p116 = por %p114, %p115
      %p117 = scmp.ne.s32.totalorder %s106, %s109
      %p118 = scmp.eq.s32.totalorder %s23, 1
      %p119 = por %p117, %p118
      %p120 = scmp.ne.s32.totalorder %s109, %s110
      %p121 = scmp.eq.s32.totalorder %s23, 0
      %p122 = por %p120, %p121
      %p123 = scmp.ne.s32.totalorder %s109, %s110
      %p124 = scmp.eq.s32.totalorder %s24, 1
      %p125 = por %p123, %p124
      %p127 = scmp.ne.s32.totalorder %s110, %s126
      %p128 = scmp.eq.s32.totalorder %s24, 0
      %p129 = por %p127, %p128
      %p130 = scmp.le.s32.totalorder 1, %s18
      %p131 = scmp.lt.s32.totalorder %s18, 3
      %p132 = pnand %p130, %p131
      %p133 = pneg %p132
      // Predicated region
      $region9: #{tpu_custom_call.1} parent=5 // pred_check
        _
      $region10: #{tpu_custom_call.1} parent=5 // pred_check_branch
        %135 = sbr.rel (%p132) target = $region12
      $region11: #{tpu_custom_call.1} parent=5 // pred_region
        %s136 = ssub.s32 %s18, 1
      $region12: #{tpu_custom_call.1} parent=5 // pred_fallthru
        _
      %p137 = scmp.lt.s32.totalorder %s18, 2
      // Predicated region
      $region13: #{tpu_custom_call.1} parent=5 // pred_check
        %p138 = pneg %p137
      $region14: #{tpu_custom_call.1} parent=5 // pred_check_branch
        %140 = sbr.rel (%p138) target = $region16
      $region15: #{tpu_custom_call.1} parent=5 // pred_region
        // Predicated region
        $region17: #{tpu_custom_call.1} parent=15 // pred_check
          %p141 = pneg %p38
        $region18: #{tpu_custom_call.1} parent=15 // pred_check_branch
          %143 = sbr.rel (%p141) target = $region20
        $region19: #{tpu_custom_call.1} parent=15 // pred_region
          %s144 = sand.u32 %s28, 1
          %s145 = scalar_lea.sflag [#allocation3], %s144
          %s146 = sand.u32 %s28, 1
          %s147 = smul.addr %s146, 1024
          %s148 = scalar_lea.vmem [#allocation2], %s147
          %s149 = smul.u32 16, %s18
          %151 = vsyncadd %s145, 0
          %s152 = smul.addr %s149, 8
          %s153 = smul.addr %s152, 8
          %s154 = scalar_lea.hbm %s0, %s153
          %s155 = sshll.u32 %s154, 4
          %s156 = int_to_ptr.hbm [resolvable:$true] %s155
          %s157 = sshll.u32 %s148, 4
          %s158 = int_to_ptr.vmem [resolvable:$true] %s157
          %163 = dma.hbm_to_vmem [thread:$0]  %s156, 16384, %s158, %s145, 1024, 1024, 64
        $region20: #{tpu_custom_call.1} parent=15 // pred_fallthru
          _
        // Predicated region
        $region21: #{tpu_custom_call.1} parent=15 // pred_check
          %p164 = pneg %p64
        $region22: #{tpu_custom_call.1} parent=15 // pred_check_branch
          %166 = sbr.rel (%p164) target = $region24
        $region23: #{tpu_custom_call.1} parent=15 // pred_region
          %s167 = sand.u32 %s18, 1
          %s168 = scalar_lea.sflag [#allocation6], %s167
          %s169 = sand.u32 %s54, 1
          %s170 = smul.addr %s169, 1024
          %s171 = scalar_lea.vmem [#allocation5], %s170
          %s172 = smul.u32 16, %s18
          %174 = vsyncadd %s168, 0
          %s175 = smul.addr %s172, 8
          %s176 = smul.addr %s175, 8
          %s177 = scalar_lea.hbm %s1, %s176
          %s178 = sshll.u32 %s177, 4
          %s179 = int_to_ptr.hbm [resolvable:$true] %s178
          %s180 = sshll.u32 %s171, 4
          %s181 = int_to_ptr.vmem [resolvable:$true] %s180
          %186 = dma.hbm_to_vmem [thread:$0]  %s179, 16384, %s181, %s168, 1024, 1024, 64
        $region24: #{tpu_custom_call.1} parent=15 // pred_fallthru
          _
        // Predicated region
        $region25: #{tpu_custom_call.1} parent=15 // pred_check
          %p187 = pneg %p90
        $region26: #{tpu_custom_call.1} parent=15 // pred_check_branch
          %189 = sbr.rel (%p187) target = $region28
        $region27: #{tpu_custom_call.1} parent=15 // pred_region
          %s190 = sand.u32 %s18, 1
          %s191 = scalar_lea.sflag [#allocation6], %s190
          %s192 = sand.u32 %s80, 1
          %s193 = smul.addr %s192, 1024
          %s194 = scalar_lea.vmem [#allocation7], %s193
          %s195 = smul.u32 16, %s18
          %197 = vsyncadd %s191, 0
          %s198 = smul.addr %s195, 8
          %s199 = smul.addr %s198, 8
          %s200 = scalar_lea.hbm %s2, %s199
          %s201 = sshll.u32 %s200, 4
          %s202 = int_to_ptr.hbm [resolvable:$true] %s201
          %s203 = sshll.u32 %s194, 4
          %s204 = int_to_ptr.vmem [resolvable:$true] %s203
          %209 = dma.hbm_to_vmem [thread:$0]  %s202, 16384, %s204, %s191, 1024, 1024, 64
        $region28: #{tpu_custom_call.1} parent=15 // pred_fallthru
          _
      $region16: #{tpu_custom_call.1} parent=5 // pred_fallthru
        _
      %p210 = scmp.le.s32.totalorder 1, %s18
      %p211 = scmp.lt.s32.totalorder %s18, 3
      %p212 = pnand %p210, %p211
      %p213 = pneg %p212
      // Predicated region
      $region29: #{tpu_custom_call.1} parent=5 // pred_check
        _
      $region30: #{tpu_custom_call.1} parent=5 // pred_check_branch
        %215 = sbr.rel (%p212) target = $region32
      $region31: #{tpu_custom_call.1} parent=5 // pred_region
        %s216 = ssub.s32 %s18, 1
        %s217 = sand.u32 %s31, 1
        %s218 = scalar_lea.sflag [#allocation3], %s217
        %s219 = sand.u32 %s31, 1
        %s220 = smul.addr %s219, 1024
        %s221 = scalar_lea.vmem [#allocation2], %s220
        // Predicated region
        $region33: #{tpu_custom_call.1} parent=31 // pred_check
          %p222 = pneg %p44
        $region34: #{tpu_custom_call.1} parent=31 // pred_check_branch
          %224 = sbr.rel (%p222) target = $region36
        $region35: #{tpu_custom_call.1} parent=31 // pred_region
          %226 = dma.done %s218, 16384
        $region36: #{tpu_custom_call.1} parent=31 // pred_fallthru
          _
        %s227 = sand.u32 %s23, 1
        %s228 = scalar_lea.sflag [#allocation6], %s227
        %s229 = sand.u32 %s57, 1
        %s230 = smul.addr %s229, 1024
        %s231 = scalar_lea.vmem [#allocation5], %s230
        // Predicated region
        $region37: #{tpu_custom_call.1} parent=31 // pred_check
          %p232 = pneg %p70
        $region38: #{tpu_custom_call.1} parent=31 // pred_check_branch
          %234 = sbr.rel (%p232) target = $region40
        $region39: #{tpu_custom_call.1} parent=31 // pred_region
          %236 = dma.done %s228, 16384
        $region40: #{tpu_custom_call.1} parent=31 // pred_fallthru
          _
        %s237 = sand.u32 %s23, 1
        %s238 = scalar_lea.sflag [#allocation6], %s237
        %s239 = sand.u32 %s83, 1
        %s240 = smul.addr %s239, 1024
        %s241 = scalar_lea.vmem [#allocation7], %s240
        // Predicated region
        $region41: #{tpu_custom_call.1} parent=31 // pred_check
          %p242 = pneg %p96
        $region42: #{tpu_custom_call.1} parent=31 // pred_check_branch
          %244 = sbr.rel (%p242) target = $region44
        $region43: #{tpu_custom_call.1} parent=31 // pred_region
          %246 = dma.done %s238, 16384
        $region44: #{tpu_custom_call.1} parent=31 // pred_fallthru
          _
        %s247 = sand.u32 %s31, 1
        %s248 = scalar_lea.sflag [#allocation3], %s247
        %s249 = sand.u32 %s31, 1
        %s250 = smul.addr %s249, 1024
        %s251 = scalar_lea.vmem [#allocation2], %s250
        %p252 = pneg %p44
        %p253 = pneg %p41
        %s254 = sand.u32 %s23, 1
        %s255 = scalar_lea.sflag [#allocation6], %s254
        %s256 = sand.u32 %s57, 1
        %s257 = smul.addr %s256, 1024
        %s258 = scalar_lea.vmem [#allocation5], %s257
        %p259 = pneg %p70
        %p260 = pneg %p67
        %s261 = sand.u32 %s23, 1
        %s262 = scalar_lea.sflag [#allocation6], %s261
        %s263 = sand.u32 %s83, 1
        %s264 = smul.addr %s263, 1024
        %s265 = scalar_lea.vmem [#allocation7], %s264
        %p266 = pneg %p96
        %p267 = pneg %p93
        %p268 = pneg %p122
        %p269 = pneg %p119
        %s270 = sand.u32 %s109, 1
        %s271 = scalar_lea.sflag [#allocation4], %s270
        %s272 = sand.u32 %s109, 1
        %s273 = smul.addr %s272, 1024
        %s274 = scalar_lea.vmem [#allocation8], %s273
        %s275 = smul.u32 16, %s23
        %s276 = smul.u32 16, %s23
        %s277 = smul.u32 16, %s23
        %s278 = smul.u32 16, %s23
        %v279 = vld [vmem:[%s221] sm:$0xff]
        %v280 = vld [vmem:[%s221 + $0x8] sm:$0xff]
        %v281 = vld [vmem:[%s221 + $0x10] sm:$0xff]
        %v282 = vld [vmem:[%s221 + $0x18] sm:$0xff]
        %v283 = vld [vmem:[%s221 + $0x20] sm:$0xff]
        %v284 = vld [vmem:[%s221 + $0x28] sm:$0xff]
        %v285 = vld [vmem:[%s221 + $0x30] sm:$0xff]
        %v286 = vld [vmem:[%s221 + $0x38] sm:$0xff]
        %v287 = vld [vmem:[%s221 + $0x40] sm:$0xff]
        %v288 = vld [vmem:[%s221 + $0x48] sm:$0xff]
        %v289 = vld [vmem:[%s221 + $0x50] sm:$0xff]
        %v290 = vld [vmem:[%s221 + $0x58] sm:$0xff]
        %v291 = vld [vmem:[%s221 + $0x60] sm:$0xff]
        %v292 = vld [vmem:[%s221 + $0x68] sm:$0xff]
        %v293 = vld [vmem:[%s221 + $0x70] sm:$0xff]
        %v294 = vld [vmem:[%s221 + $0x78] sm:$0xff]
        %v295 = vld [vmem:[%s221 + $0x80] sm:$0xff]
        %v296 = vld [vmem:[%s221 + $0x88] sm:$0xff]
        %v297 = vld [vmem:[%s221 + $0x90] sm:$0xff]
        %v298 = vld [vmem:[%s221 + $0x98] sm:$0xff]
        %v299 = vld [vmem:[%s221 + $0xa0] sm:$0xff]
        %v300 = vld [vmem:[%s221 + $0xa8] sm:$0xff]
        %v301 = vld [vmem:[%s221 + $0xb0] sm:$0xff]
        %v302 = vld [vmem:[%s221 + $0xb8] sm:$0xff]
        %v303 = vld [vmem:[%s221 + $0xc0] sm:$0xff]
        %v304 = vld [vmem:[%s221 + $0xc8] sm:$0xff]
        %v305 = vld [vmem:[%s221 + $0xd0] sm:$0xff]
        %v306 = vld [vmem:[%s221 + $0xd8] sm:$0xff]
        %v307 = vld [vmem:[%s221 + $0xe0] sm:$0xff]
        %v308 = vld [vmem:[%s221 + $0xe8] sm:$0xff]
        %v309 = vld [vmem:[%s221 + $0xf0] sm:$0xff]
        %v310 = vld [vmem:[%s221 + $0xf8] sm:$0xff]
        %v311 = vld [vmem:[%s221 + $0x100] sm:$0xff]
        %v312 = vld [vmem:[%s221 + $0x108] sm:$0xff]
        %v313 = vld [vmem:[%s221 + $0x110] sm:$0xff]
        %v314 = vld [vmem:[%s221 + $0x118] sm:$0xff]
        %v315 = vld [vmem:[%s221 + $0x120] sm:$0xff]
        %v316 = vld [vmem:[%s221 + $0x128] sm:$0xff]
        %v317 = vld [vmem:[%s221 + $0x130] sm:$0xff]
        %v318 = vld [vmem:[%s221 + $0x138] sm:$0xff]
        %v319 = vld [vmem:[%s221 + $0x140] sm:$0xff]
        %v320 = vld [vmem:[%s221 + $0x148] sm:$0xff]
        %v321 = vld [vmem:[%s221 + $0x150] sm:$0xff]
        %v322 = vld [vmem:[%s221 + $0x158] sm:$0xff]
        %v323 = vld [vmem:[%s221 + $0x160] sm:$0xff]
        %v324 = vld [vmem:[%s221 + $0x168] sm:$0xff]
        %v325 = vld [vmem:[%s221 + $0x170] sm:$0xff]
        %v326 = vld [vmem:[%s221 + $0x178] sm:$0xff]
        %v327 = vld [vmem:[%s221 + $0x180] sm:$0xff]
        %v328 = vld [vmem:[%s221 + $0x188] sm:$0xff]
        %v329 = vld [vmem:[%s221 + $0x190] sm:$0xff]
        %v330 = vld [vmem:[%s221 + $0x198] sm:$0xff]
        %v331 = vld [vmem:[%s221 + $0x1a0] sm:$0xff]
        %v332 = vld [vmem:[%s221 + $0x1a8] sm:$0xff]
        %v333 = vld [vmem:[%s221 + $0x1b0] sm:$0xff]
        %v334 = vld [vmem:[%s221 + $0x1b8] sm:$0xff]
        %v335 = vld [vmem:[%s221 + $0x1c0] sm:$0xff]
        %v336 = vld [vmem:[%s221 + $0x1c8] sm:$0xff]
        %v337 = vld [vmem:[%s221 + $0x1d0] sm:$0xff]
        %v338 = vld [vmem:[%s221 + $0x1d8] sm:$0xff]
        %v339 = vld [vmem:[%s221 + $0x1e0] sm:$0xff]
        %v340 = vld [vmem:[%s221 + $0x1e8] sm:$0xff]
        %v341 = vld [vmem:[%s221 + $0x1f0] sm:$0xff]
        %v342 = vld [vmem:[%s221 + $0x1f8] sm:$0xff]
        %v343 = vld [vmem:[%s221 + $0x200] sm:$0xff]
        %v344 = vld [vmem:[%s221 + $0x208] sm:$0xff]
        %v345 = vld [vmem:[%s221 + $0x210] sm:$0xff]
        %v346 = vld [vmem:[%s221 + $0x218] sm:$0xff]
        %v347 = vld [vmem:[%s221 + $0x220] sm:$0xff]
        %v348 = vld [vmem:[%s221 + $0x228] sm:$0xff]
        %v349 = vld [vmem:[%s221 + $0x230] sm:$0xff]
        %v350 = vld [vmem:[%s221 + $0x238] sm:$0xff]
        %v351 = vld [vmem:[%s221 + $0x240] sm:$0xff]
        %v352 = vld [vmem:[%s221 + $0x248] sm:$0xff]
        %v353 = vld [vmem:[%s221 + $0x250] sm:$0xff]
        %v354 = vld [vmem:[%s221 + $0x258] sm:$0xff]
        %v355 = vld [vmem:[%s221 + $0x260] sm:$0xff]
        %v356 = vld [vmem:[%s221 + $0x268] sm:$0xff]
        %v357 = vld [vmem:[%s221 + $0x270] sm:$0xff]
        %v358 = vld [vmem:[%s221 + $0x278] sm:$0xff]
        %v359 = vld [vmem:[%s221 + $0x280] sm:$0xff]
        %v360 = vld [vmem:[%s221 + $0x288] sm:$0xff]
        %v361 = vld [vmem:[%s221 + $0x290] sm:$0xff]
        %v362 = vld [vmem:[%s221 + $0x298] sm:$0xff]
        %v363 = vld [vmem:[%s221 + $0x2a0] sm:$0xff]
        %v364 = vld [vmem:[%s221 + $0x2a8] sm:$0xff]
        %v365 = vld [vmem:[%s221 + $0x2b0] sm:$0xff]
        %v366 = vld [vmem:[%s221 + $0x2b8] sm:$0xff]
        %v367 = vld [vmem:[%s221 + $0x2c0] sm:$0xff]
        %v368 = vld [vmem:[%s221 + $0x2c8] sm:$0xff]
        %v369 = vld [vmem:[%s221 + $0x2d0] sm:$0xff]
        %v370 = vld [vmem:[%s221 + $0x2d8] sm:$0xff]
        %v371 = vld [vmem:[%s221 + $0x2e0] sm:$0xff]
        %v372 = vld [vmem:[%s221 + $0x2e8] sm:$0xff]
        %v373 = vld [vmem:[%s221 + $0x2f0] sm:$0xff]
        %v374 = vld [vmem:[%s221 + $0x2f8] sm:$0xff]
        %v375 = vld [vmem:[%s221 + $0x300] sm:$0xff]
        %v376 = vld [vmem:[%s221 + $0x308] sm:$0xff]
        %v377 = vld [vmem:[%s221 + $0x310] sm:$0xff]
        %v378 = vld [vmem:[%s221 + $0x318] sm:$0xff]
        %v379 = vld [vmem:[%s221 + $0x320] sm:$0xff]
        %v380 = vld [vmem:[%s221 + $0x328] sm:$0xff]
        %v381 = vld [vmem:[%s221 + $0x330] sm:$0xff]
        %v382 = vld [vmem:[%s221 + $0x338] sm:$0xff]
        %v383 = vld [vmem:[%s221 + $0x340] sm:$0xff]
        %v384 = vld [vmem:[%s221 + $0x348] sm:$0xff]
        %v385 = vld [vmem:[%s221 + $0x350] sm:$0xff]
        %v386 = vld [vmem:[%s221 + $0x358] sm:$0xff]
        %v387 = vld [vmem:[%s221 + $0x360] sm:$0xff]
        %v388 = vld [vmem:[%s221 + $0x368] sm:$0xff]
        %v389 = vld [vmem:[%s221 + $0x370] sm:$0xff]
        %v390 = vld [vmem:[%s221 + $0x378] sm:$0xff]
        %v391 = vld [vmem:[%s221 + $0x380] sm:$0xff]
        %v392 = vld [vmem:[%s221 + $0x388] sm:$0xff]
        %v393 = vld [vmem:[%s221 + $0x390] sm:$0xff]
        %v394 = vld [vmem:[%s221 + $0x398] sm:$0xff]
        %v395 = vld [vmem:[%s221 + $0x3a0] sm:$0xff]
        %v396 = vld [vmem:[%s221 + $0x3a8] sm:$0xff]
        %v397 = vld [vmem:[%s221 + $0x3b0] sm:$0xff]
        %v398 = vld [vmem:[%s221 + $0x3b8] sm:$0xff]
        %v399 = vld [vmem:[%s221 + $0x3c0] sm:$0xff]
        %v400 = vld [vmem:[%s221 + $0x3c8] sm:$0xff]
        %v401 = vld [vmem:[%s221 + $0x3d0] sm:$0xff]
        %v402 = vld [vmem:[%s221 + $0x3d8] sm:$0xff]
        %v403 = vld [vmem:[%s221 + $0x3e0] sm:$0xff]
        %v404 = vld [vmem:[%s221 + $0x3e8] sm:$0xff]
        %v405 = vld [vmem:[%s221 + $0x3f0] sm:$0xff]
        %v406 = vld [vmem:[%s221 + $0x3f8] sm:$0xff]
        %v407 = vld [vmem:[%s231] sm:$0xff]
        %v408 = vld [vmem:[%s231 + $0x8] sm:$0xff]
        %v409 = vld [vmem:[%s231 + $0x10] sm:$0xff]
        %v410 = vld [vmem:[%s231 + $0x18] sm:$0xff]
        %v411 = vld [vmem:[%s231 + $0x20] sm:$0xff]
        %v412 = vld [vmem:[%s231 + $0x28] sm:$0xff]
        %v413 = vld [vmem:[%s231 + $0x30] sm:$0xff]
        %v414 = vld [vmem:[%s231 + $0x38] sm:$0xff]
        %v415 = vld [vmem:[%s231 + $0x40] sm:$0xff]
        %v416 = vld [vmem:[%s231 + $0x48] sm:$0xff]
        %v417 = vld [vmem:[%s231 + $0x50] sm:$0xff]
        %v418 = vld [vmem:[%s231 + $0x58] sm:$0xff]
        %v419 = vld [vmem:[%s231 + $0x60] sm:$0xff]
        %v420 = vld [vmem:[%s231 + $0x68] sm:$0xff]
        %v421 = vld [vmem:[%s231 + $0x70] sm:$0xff]
        %v422 = vld [vmem:[%s231 + $0x78] sm:$0xff]
        %v423 = vld [vmem:[%s231 + $0x80] sm:$0xff]
        %v424 = vld [vmem:[%s231 + $0x88] sm:$0xff]
        %v425 = vld [vmem:[%s231 + $0x90] sm:$0xff]
        %v426 = vld [vmem:[%s231 + $0x98] sm:$0xff]
        %v427 = vld [vmem:[%s231 + $0xa0] sm:$0xff]
        %v428 = vld [vmem:[%s231 + $0xa8] sm:$0xff]
        %v429 = vld [vmem:[%s231 + $0xb0] sm:$0xff]
        %v430 = vld [vmem:[%s231 + $0xb8] sm:$0xff]
        %v431 = vld [vmem:[%s231 + $0xc0] sm:$0xff]
        %v432 = vld [vmem:[%s231 + $0xc8] sm:$0xff]
        %v433 = vld [vmem:[%s231 + $0xd0] sm:$0xff]
        %v434 = vld [vmem:[%s231 + $0xd8] sm:$0xff]
        %v435 = vld [vmem:[%s231 + $0xe0] sm:$0xff]
        %v436 = vld [vmem:[%s231 + $0xe8] sm:$0xff]
        %v437 = vld [vmem:[%s231 + $0xf0] sm:$0xff]
        %v438 = vld [vmem:[%s231 + $0xf8] sm:$0xff]
        %v439 = vld [vmem:[%s231 + $0x100] sm:$0xff]
        %v440 = vld [vmem:[%s231 + $0x108] sm:$0xff]
        %v441 = vld [vmem:[%s231 + $0x110] sm:$0xff]
        %v442 = vld [vmem:[%s231 + $0x118] sm:$0xff]
        %v443 = vld [vmem:[%s231 + $0x120] sm:$0xff]
        %v444 = vld [vmem:[%s231 + $0x128] sm:$0xff]
        %v445 = vld [vmem:[%s231 + $0x130] sm:$0xff]
        %v446 = vld [vmem:[%s231 + $0x138] sm:$0xff]
        %v447 = vld [vmem:[%s231 + $0x140] sm:$0xff]
        %v448 = vld [vmem:[%s231 + $0x148] sm:$0xff]
        %v449 = vld [vmem:[%s231 + $0x150] sm:$0xff]
        %v450 = vld [vmem:[%s231 + $0x158] sm:$0xff]
        %v451 = vld [vmem:[%s231 + $0x160] sm:$0xff]
        %v452 = vld [vmem:[%s231 + $0x168] sm:$0xff]
        %v453 = vld [vmem:[%s231 + $0x170] sm:$0xff]
        %v454 = vld [vmem:[%s231 + $0x178] sm:$0xff]
        %v455 = vld [vmem:[%s231 + $0x180] sm:$0xff]
        %v456 = vld [vmem:[%s231 + $0x188] sm:$0xff]
        %v457 = vld [vmem:[%s231 + $0x190] sm:$0xff]
        %v458 = vld [vmem:[%s231 + $0x198] sm:$0xff]
        %v459 = vld [vmem:[%s231 + $0x1a0] sm:$0xff]
        %v460 = vld [vmem:[%s231 + $0x1a8] sm:$0xff]
        %v461 = vld [vmem:[%s231 + $0x1b0] sm:$0xff]
        %v462 = vld [vmem:[%s231 + $0x1b8] sm:$0xff]
        %v463 = vld [vmem:[%s231 + $0x1c0] sm:$0xff]
        %v464 = vld [vmem:[%s231 + $0x1c8] sm:$0xff]
        %v465 = vld [vmem:[%s231 + $0x1d0] sm:$0xff]
        %v466 = vld [vmem:[%s231 + $0x1d8] sm:$0xff]
        %v467 = vld [vmem:[%s231 + $0x1e0] sm:$0xff]
        %v468 = vld [vmem:[%s231 + $0x1e8] sm:$0xff]
        %v469 = vld [vmem:[%s231 + $0x1f0] sm:$0xff]
        %v470 = vld [vmem:[%s231 + $0x1f8] sm:$0xff]
        %v471 = vld [vmem:[%s231 + $0x200] sm:$0xff]
        %v472 = vld [vmem:[%s231 + $0x208] sm:$0xff]
        %v473 = vld [vmem:[%s231 + $0x210] sm:$0xff]
        %v474 = vld [vmem:[%s231 + $0x218] sm:$0xff]
        %v475 = vld [vmem:[%s231 + $0x220] sm:$0xff]
        %v476 = vld [vmem:[%s231 + $0x228] sm:$0xff]
        %v477 = vld [vmem:[%s231 + $0x230] sm:$0xff]
        %v478 = vld [vmem:[%s231 + $0x238] sm:$0xff]
        %v479 = vld [vmem:[%s231 + $0x240] sm:$0xff]
        %v480 = vld [vmem:[%s231 + $0x248] sm:$0xff]
        %v481 = vld [vmem:[%s231 + $0x250] sm:$0xff]
        %v482 = vld [vmem:[%s231 + $0x258] sm:$0xff]
        %v483 = vld [vmem:[%s231 + $0x260] sm:$0xff]
        %v484 = vld [vmem:[%s231 + $0x268] sm:$0xff]
        %v485 = vld [vmem:[%s231 + $0x270] sm:$0xff]
        %v486 = vld [vmem:[%s231 + $0x278] sm:$0xff]
        %v487 = vld [vmem:[%s231 + $0x280] sm:$0xff]
        %v488 = vld [vmem:[%s231 + $0x288] sm:$0xff]
        %v489 = vld [vmem:[%s231 + $0x290] sm:$0xff]
        %v490 = vld [vmem:[%s231 + $0x298] sm:$0xff]
        %v491 = vld [vmem:[%s231 + $0x2a0] sm:$0xff]
        %v492 = vld [vmem:[%s231 + $0x2a8] sm:$0xff]
        %v493 = vld [vmem:[%s231 + $0x2b0] sm:$0xff]
        %v494 = vld [vmem:[%s231 + $0x2b8] sm:$0xff]
        %v495 = vld [vmem:[%s231 + $0x2c0] sm:$0xff]
        %v496 = vld [vmem:[%s231 + $0x2c8] sm:$0xff]
        %v497 = vld [vmem:[%s231 + $0x2d0] sm:$0xff]
        %v498 = vld [vmem:[%s231 + $0x2d8] sm:$0xff]
        %v499 = vld [vmem:[%s231 + $0x2e0] sm:$0xff]
        %v500 = vld [vmem:[%s231 + $0x2e8] sm:$0xff]
        %v501 = vld [vmem:[%s231 + $0x2f0] sm:$0xff]
        %v502 = vld [vmem:[%s231 + $0x2f8] sm:$0xff]
        %v503 = vld [vmem:[%s231 + $0x300] sm:$0xff]
        %v504 = vld [vmem:[%s231 + $0x308] sm:$0xff]
        %v505 = vld [vmem:[%s231 + $0x310] sm:$0xff]
        %v506 = vld [vmem:[%s231 + $0x318] sm:$0xff]
        %v507 = vld [vmem:[%s231 + $0x320] sm:$0xff]
        %v508 = vld [vmem:[%s231 + $0x328] sm:$0xff]
        %v509 = vld [vmem:[%s231 + $0x330] sm:$0xff]
        %v510 = vld [vmem:[%s231 + $0x338] sm:$0xff]
        %v511 = vld [vmem:[%s231 + $0x340] sm:$0xff]
        %v512 = vld [vmem:[%s231 + $0x348] sm:$0xff]
        %v513 = vld [vmem:[%s231 + $0x350] sm:$0xff]
        %v514 = vld [vmem:[%s231 + $0x358] sm:$0xff]
        %v515 = vld [vmem:[%s231 + $0x360] sm:$0xff]
        %v516 = vld [vmem:[%s231 + $0x368] sm:$0xff]
        %v517 = vld [vmem:[%s231 + $0x370] sm:$0xff]
        %v518 = vld [vmem:[%s231 + $0x378] sm:$0xff]
        %v519 = vld [vmem:[%s231 + $0x380] sm:$0xff]
        %v520 = vld [vmem:[%s231 + $0x388] sm:$0xff]
        %v521 = vld [vmem:[%s231 + $0x390] sm:$0xff]
        %v522 = vld [vmem:[%s231 + $0x398] sm:$0xff]
        %v523 = vld [vmem:[%s231 + $0x3a0] sm:$0xff]
        %v524 = vld [vmem:[%s231 + $0x3a8] sm:$0xff]
        %v525 = vld [vmem:[%s231 + $0x3b0] sm:$0xff]
        %v526 = vld [vmem:[%s231 + $0x3b8] sm:$0xff]
        %v527 = vld [vmem:[%s231 + $0x3c0] sm:$0xff]
        %v528 = vld [vmem:[%s231 + $0x3c8] sm:$0xff]
        %v529 = vld [vmem:[%s231 + $0x3d0] sm:$0xff]
        %v530 = vld [vmem:[%s231 + $0x3d8] sm:$0xff]
        %v531 = vld [vmem:[%s231 + $0x3e0] sm:$0xff]
        %v532 = vld [vmem:[%s231 + $0x3e8] sm:$0xff]
        %v533 = vld [vmem:[%s231 + $0x3f0] sm:$0xff]
        %v534 = vld [vmem:[%s231 + $0x3f8] sm:$0xff]
        %v535 = vadd.f32 %v279, %v407
        %v536 = vadd.f32 %v280, %v408
        %v537 = vadd.f32 %v281, %v409
        %v538 = vadd.f32 %v282, %v410
        %v539 = vadd.f32 %v283, %v411
        %v540 = vadd.f32 %v284, %v412
        %v541 = vadd.f32 %v285, %v413
        %v542 = vadd.f32 %v286, %v414
        %v543 = vadd.f32 %v287, %v415
        %v544 = vadd.f32 %v288, %v416
        %v545 = vadd.f32 %v289, %v417
        %v546 = vadd.f32 %v290, %v418
        %v547 = vadd.f32 %v291, %v419
        %v548 = vadd.f32 %v292, %v420
        %v549 = vadd.f32 %v293, %v421
        %v550 = vadd.f32 %v294, %v422
        %v551 = vadd.f32 %v295, %v423
        %v552 = vadd.f32 %v296, %v424
        %v553 = vadd.f32 %v297, %v425
        %v554 = vadd.f32 %v298, %v426
        %v555 = vadd.f32 %v299, %v427
        %v556 = vadd.f32 %v300, %v428
        %v557 = vadd.f32 %v301, %v429
        %v558 = vadd.f32 %v302, %v430
        %v559 = vadd.f32 %v303, %v431
        %v560 = vadd.f32 %v304, %v432
        %v561 = vadd.f32 %v305, %v433
        %v562 = vadd.f32 %v306, %v434
        %v563 = vadd.f32 %v307, %v435
        %v564 = vadd.f32 %v308, %v436
        %v565 = vadd.f32 %v309, %v437
        %v566 = vadd.f32 %v310, %v438
        %v567 = vadd.f32 %v311, %v439
        %v568 = vadd.f32 %v312, %v440
        %v569 = vadd.f32 %v313, %v441
        %v570 = vadd.f32 %v314, %v442
        %v571 = vadd.f32 %v315, %v443
        %v572 = vadd.f32 %v316, %v444
        %v573 = vadd.f32 %v317, %v445
        %v574 = vadd.f32 %v318, %v446
        %v575 = vadd.f32 %v319, %v447
        %v576 = vadd.f32 %v320, %v448
        %v577 = vadd.f32 %v321, %v449
        %v578 = vadd.f32 %v322, %v450
        %v579 = vadd.f32 %v323, %v451
        %v580 = vadd.f32 %v324, %v452
        %v581 = vadd.f32 %v325, %v453
        %v582 = vadd.f32 %v326, %v454
        %v583 = vadd.f32 %v327, %v455
        %v584 = vadd.f32 %v328, %v456
        %v585 = vadd.f32 %v329, %v457
        %v586 = vadd.f32 %v330, %v458
        %v587 = vadd.f32 %v331, %v459
        %v588 = vadd.f32 %v332, %v460
        %v589 = vadd.f32 %v333, %v461
        %v590 = vadd.f32 %v334, %v462
        %v591 = vadd.f32 %v335, %v463
        %v592 = vadd.f32 %v336, %v464
        %v593 = vadd.f32 %v337, %v465
        %v594 = vadd.f32 %v338, %v466
        %v595 = vadd.f32 %v339, %v467
        %v596 = vadd.f32 %v340, %v468
        %v597 = vadd.f32 %v341, %v469
        %v598 = vadd.f32 %v342, %v470
        %v599 = vadd.f32 %v343, %v471
        %v600 = vadd.f32 %v344, %v472
        %v601 = vadd.f32 %v345, %v473
        %v602 = vadd.f32 %v346, %v474
        %v603 = vadd.f32 %v347, %v475
        %v604 = vadd.f32 %v348, %v476
        %v605 = vadd.f32 %v349, %v477
        %v606 = vadd.f32 %v350, %v478
        %v607 = vadd.f32 %v351, %v479
        %v608 = vadd.f32 %v352, %v480
        %v609 = vadd.f32 %v353, %v481
        %v610 = vadd.f32 %v354, %v482
        %v611 = vadd.f32 %v355, %v483
        %v612 = vadd.f32 %v356, %v484
        %v613 = vadd.f32 %v357, %v485
        %v614 = vadd.f32 %v358, %v486
        %v615 = vadd.f32 %v359, %v487
        %v616 = vadd.f32 %v360, %v488
        %v617 = vadd.f32 %v361, %v489
        %v618 = vadd.f32 %v362, %v490
        %v619 = vadd.f32 %v363, %v491
        %v620 = vadd.f32 %v364, %v492
        %v621 = vadd.f32 %v365, %v493
        %v622 = vadd.f32 %v366, %v494
        %v623 = vadd.f32 %v367, %v495
        %v624 = vadd.f32 %v368, %v496
        %v625 = vadd.f32 %v369, %v497
        %v626 = vadd.f32 %v370, %v498
        %v627 = vadd.f32 %v371, %v499
        %v628 = vadd.f32 %v372, %v500
        %v629 = vadd.f32 %v373, %v501
        %v630 = vadd.f32 %v374, %v502
        %v631 = vadd.f32 %v375, %v503
        %v632 = vadd.f32 %v376, %v504
        %v633 = vadd.f32 %v377, %v505
        %v634 = vadd.f32 %v378, %v506
        %v635 = vadd.f32 %v379, %v507
        %v636 = vadd.f32 %v380, %v508
        %v637 = vadd.f32 %v381, %v509
        %v638 = vadd.f32 %v382, %v510
        %v639 = vadd.f32 %v383, %v511
        %v640 = vadd.f32 %v384, %v512
        %v641 = vadd.f32 %v385, %v513
        %v642 = vadd.f32 %v386, %v514
        %v643 = vadd.f32 %v387, %v515
        %v644 = vadd.f32 %v388, %v516
        %v645 = vadd.f32 %v389, %v517
        %v646 = vadd.f32 %v390, %v518
        %v647 = vadd.f32 %v391, %v519
        %v648 = vadd.f32 %v392, %v520
        %v649 = vadd.f32 %v393, %v521
        %v650 = vadd.f32 %v394, %v522
        %v651 = vadd.f32 %v395, %v523
        %v652 = vadd.f32 %v396, %v524
        %v653 = vadd.f32 %v397, %v525
        %v654 = vadd.f32 %v398, %v526
        %v655 = vadd.f32 %v399, %v527
        %v656 = vadd.f32 %v400, %v528
        %v657 = vadd.f32 %v401, %v529
        %v658 = vadd.f32 %v402, %v530
        %v659 = vadd.f32 %v403, %v531
        %v660 = vadd.f32 %v404, %v532
        %v661 = vadd.f32 %v405, %v533
        %v662 = vadd.f32 %v406, %v534
        %v663 = vld [vmem:[%s241] sm:$0xff]
        %v664 = vld [vmem:[%s241 + $0x8] sm:$0xff]
        %v665 = vld [vmem:[%s241 + $0x10] sm:$0xff]
        %v666 = vld [vmem:[%s241 + $0x18] sm:$0xff]
        %v667 = vld [vmem:[%s241 + $0x20] sm:$0xff]
        %v668 = vld [vmem:[%s241 + $0x28] sm:$0xff]
        %v669 = vld [vmem:[%s241 + $0x30] sm:$0xff]
        %v670 = vld [vmem:[%s241 + $0x38] sm:$0xff]
        %v671 = vld [vmem:[%s241 + $0x40] sm:$0xff]
        %v672 = vld [vmem:[%s241 + $0x48] sm:$0xff]
        %v673 = vld [vmem:[%s241 + $0x50] sm:$0xff]
        %v674 = vld [vmem:[%s241 + $0x58] sm:$0xff]
        %v675 = vld [vmem:[%s241 + $0x60] sm:$0xff]
        %v676 = vld [vmem:[%s241 + $0x68] sm:$0xff]
        %v677 = vld [vmem:[%s241 + $0x70] sm:$0xff]
        %v678 = vld [vmem:[%s241 + $0x78] sm:$0xff]
        %v679 = vld [vmem:[%s241 + $0x80] sm:$0xff]
        %v680 = vld [vmem:[%s241 + $0x88] sm:$0xff]
        %v681 = vld [vmem:[%s241 + $0x90] sm:$0xff]
        %v682 = vld [vmem:[%s241 + $0x98] sm:$0xff]
        %v683 = vld [vmem:[%s241 + $0xa0] sm:$0xff]
        %v684 = vld [vmem:[%s241 + $0xa8] sm:$0xff]
        %v685 = vld [vmem:[%s241 + $0xb0] sm:$0xff]
        %v686 = vld [vmem:[%s241 + $0xb8] sm:$0xff]
        %v687 = vld [vmem:[%s241 + $0xc0] sm:$0xff]
        %v688 = vld [vmem:[%s241 + $0xc8] sm:$0xff]
        %v689 = vld [vmem:[%s241 + $0xd0] sm:$0xff]
        %v690 = vld [vmem:[%s241 + $0xd8] sm:$0xff]
        %v691 = vld [vmem:[%s241 + $0xe0] sm:$0xff]
        %v692 = vld [vmem:[%s241 + $0xe8] sm:$0xff]
        %v693 = vld [vmem:[%s241 + $0xf0] sm:$0xff]
        %v694 = vld [vmem:[%s241 + $0xf8] sm:$0xff]
        %v695 = vld [vmem:[%s241 + $0x100] sm:$0xff]
        %v696 = vld [vmem:[%s241 + $0x108] sm:$0xff]
        %v697 = vld [vmem:[%s241 + $0x110] sm:$0xff]
        %v698 = vld [vmem:[%s241 + $0x118] sm:$0xff]
        %v699 = vld [vmem:[%s241 + $0x120] sm:$0xff]
        %v700 = vld [vmem:[%s241 + $0x128] sm:$0xff]
        %v701 = vld [vmem:[%s241 + $0x130] sm:$0xff]
        %v702 = vld [vmem:[%s241 + $0x138] sm:$0xff]
        %v703 = vld [vmem:[%s241 + $0x140] sm:$0xff]
        %v704 = vld [vmem:[%s241 + $0x148] sm:$0xff]
        %v705 = vld [vmem:[%s241 + $0x150] sm:$0xff]
        %v706 = vld [vmem:[%s241 + $0x158] sm:$0xff]
        %v707 = vld [vmem:[%s241 + $0x160] sm:$0xff]
        %v708 = vld [vmem:[%s241 + $0x168] sm:$0xff]
        %v709 = vld [vmem:[%s241 + $0x170] sm:$0xff]
        %v710 = vld [vmem:[%s241 + $0x178] sm:$0xff]
        %v711 = vld [vmem:[%s241 + $0x180] sm:$0xff]
        %v712 = vld [vmem:[%s241 + $0x188] sm:$0xff]
        %v713 = vld [vmem:[%s241 + $0x190] sm:$0xff]
        %v714 = vld [vmem:[%s241 + $0x198] sm:$0xff]
        %v715 = vld [vmem:[%s241 + $0x1a0] sm:$0xff]
        %v716 = vld [vmem:[%s241 + $0x1a8] sm:$0xff]
        %v717 = vld [vmem:[%s241 + $0x1b0] sm:$0xff]
        %v718 = vld [vmem:[%s241 + $0x1b8] sm:$0xff]
        %v719 = vld [vmem:[%s241 + $0x1c0] sm:$0xff]
        %v720 = vld [vmem:[%s241 + $0x1c8] sm:$0xff]
        %v721 = vld [vmem:[%s241 + $0x1d0] sm:$0xff]
        %v722 = vld [vmem:[%s241 + $0x1d8] sm:$0xff]
        %v723 = vld [vmem:[%s241 + $0x1e0] sm:$0xff]
        %v724 = vld [vmem:[%s241 + $0x1e8] sm:$0xff]
        %v725 = vld [vmem:[%s241 + $0x1f0] sm:$0xff]
        %v726 = vld [vmem:[%s241 + $0x1f8] sm:$0xff]
        %v727 = vld [vmem:[%s241 + $0x200] sm:$0xff]
        %v728 = vld [vmem:[%s241 + $0x208] sm:$0xff]
        %v729 = vld [vmem:[%s241 + $0x210] sm:$0xff]
        %v730 = vld [vmem:[%s241 + $0x218] sm:$0xff]
        %v731 = vld [vmem:[%s241 + $0x220] sm:$0xff]
        %v732 = vld [vmem:[%s241 + $0x228] sm:$0xff]
        %v733 = vld [vmem:[%s241 + $0x230] sm:$0xff]
        %v734 = vld [vmem:[%s241 + $0x238] sm:$0xff]
        %v735 = vld [vmem:[%s241 + $0x240] sm:$0xff]
        %v736 = vld [vmem:[%s241 + $0x248] sm:$0xff]
        %v737 = vld [vmem:[%s241 + $0x250] sm:$0xff]
        %v738 = vld [vmem:[%s241 + $0x258] sm:$0xff]
        %v739 = vld [vmem:[%s241 + $0x260] sm:$0xff]
        %v740 = vld [vmem:[%s241 + $0x268] sm:$0xff]
        %v741 = vld [vmem:[%s241 + $0x270] sm:$0xff]
        %v742 = vld [vmem:[%s241 + $0x278] sm:$0xff]
        %v743 = vld [vmem:[%s241 + $0x280] sm:$0xff]
        %v744 = vld [vmem:[%s241 + $0x288] sm:$0xff]
        %v745 = vld [vmem:[%s241 + $0x290] sm:$0xff]
        %v746 = vld [vmem:[%s241 + $0x298] sm:$0xff]
        %v747 = vld [vmem:[%s241 + $0x2a0] sm:$0xff]
        %v748 = vld [vmem:[%s241 + $0x2a8] sm:$0xff]
        %v749 = vld [vmem:[%s241 + $0x2b0] sm:$0xff]
        %v750 = vld [vmem:[%s241 + $0x2b8] sm:$0xff]
        %v751 = vld [vmem:[%s241 + $0x2c0] sm:$0xff]
        %v752 = vld [vmem:[%s241 + $0x2c8] sm:$0xff]
        %v753 = vld [vmem:[%s241 + $0x2d0] sm:$0xff]
        %v754 = vld [vmem:[%s241 + $0x2d8] sm:$0xff]
        %v755 = vld [vmem:[%s241 + $0x2e0] sm:$0xff]
        %v756 = vld [vmem:[%s241 + $0x2e8] sm:$0xff]
        %v757 = vld [vmem:[%s241 + $0x2f0] sm:$0xff]
        %v758 = vld [vmem:[%s241 + $0x2f8] sm:$0xff]
        %v759 = vld [vmem:[%s241 + $0x300] sm:$0xff]
        %v760 = vld [vmem:[%s241 + $0x308] sm:$0xff]
        %v761 = vld [vmem:[%s241 + $0x310] sm:$0xff]
        %v762 = vld [vmem:[%s241 + $0x318] sm:$0xff]
        %v763 = vld [vmem:[%s241 + $0x320] sm:$0xff]
        %v764 = vld [vmem:[%s241 + $0x328] sm:$0xff]
        %v765 = vld [vmem:[%s241 + $0x330] sm:$0xff]
        %v766 = vld [vmem:[%s241 + $0x338] sm:$0xff]
        %v767 = vld [vmem:[%s241 + $0x340] sm:$0xff]
        %v768 = vld [vmem:[%s241 + $0x348] sm:$0xff]
        %v769 = vld [vmem:[%s241 + $0x350] sm:$0xff]
        %v770 = vld [vmem:[%s241 + $0x358] sm:$0xff]
        %v771 = vld [vmem:[%s241 + $0x360] sm:$0xff]
        %v772 = vld [vmem:[%s241 + $0x368] sm:$0xff]
        %v773 = vld [vmem:[%s241 + $0x370] sm:$0xff]
        %v774 = vld [vmem:[%s241 + $0x378] sm:$0xff]
        %v775 = vld [vmem:[%s241 + $0x380] sm:$0xff]
        %v776 = vld [vmem:[%s241 + $0x388] sm:$0xff]
        %v777 = vld [vmem:[%s241 + $0x390] sm:$0xff]
        %v778 = vld [vmem:[%s241 + $0x398] sm:$0xff]
        %v779 = vld [vmem:[%s241 + $0x3a0] sm:$0xff]
        %v780 = vld [vmem:[%s241 + $0x3a8] sm:$0xff]
        %v781 = vld [vmem:[%s241 + $0x3b0] sm:$0xff]
        %v782 = vld [vmem:[%s241 + $0x3b8] sm:$0xff]
        %v783 = vld [vmem:[%s241 + $0x3c0] sm:$0xff]
        %v784 = vld [vmem:[%s241 + $0x3c8] sm:$0xff]
        %v785 = vld [vmem:[%s241 + $0x3d0] sm:$0xff]
        %v786 = vld [vmem:[%s241 + $0x3d8] sm:$0xff]
        %v787 = vld [vmem:[%s241 + $0x3e0] sm:$0xff]
        %v788 = vld [vmem:[%s241 + $0x3e8] sm:$0xff]
        %v789 = vld [vmem:[%s241 + $0x3f0] sm:$0xff]
        %v790 = vld [vmem:[%s241 + $0x3f8] sm:$0xff]
        %v791 = vadd.f32 %v535, %v663
        %v792 = vadd.f32 %v536, %v664
        %v793 = vadd.f32 %v537, %v665
        %v794 = vadd.f32 %v538, %v666
        %v795 = vadd.f32 %v539, %v667
        %v796 = vadd.f32 %v540, %v668
        %v797 = vadd.f32 %v541, %v669
        %v798 = vadd.f32 %v542, %v670
        %v799 = vadd.f32 %v543, %v671
        %v800 = vadd.f32 %v544, %v672
        %v801 = vadd.f32 %v545, %v673
        %v802 = vadd.f32 %v546, %v674
        %v803 = vadd.f32 %v547, %v675
        %v804 = vadd.f32 %v548, %v676
        %v805 = vadd.f32 %v549, %v677
        %v806 = vadd.f32 %v550, %v678
        %v807 = vadd.f32 %v551, %v679
        %v808 = vadd.f32 %v552, %v680
        %v809 = vadd.f32 %v553, %v681
        %v810 = vadd.f32 %v554, %v682
        %v811 = vadd.f32 %v555, %v683
        %v812 = vadd.f32 %v556, %v684
        %v813 = vadd.f32 %v557, %v685
        %v814 = vadd.f32 %v558, %v686
        %v815 = vadd.f32 %v559, %v687
        %v816 = vadd.f32 %v560, %v688
        %v817 = vadd.f32 %v561, %v689
        %v818 = vadd.f32 %v562, %v690
        %v819 = vadd.f32 %v563, %v691
        %v820 = vadd.f32 %v564, %v692
        %v821 = vadd.f32 %v565, %v693
        %v822 = vadd.f32 %v566, %v694
        %v823 = vadd.f32 %v567, %v695
        %v824 = vadd.f32 %v568, %v696
        %v825 = vadd.f32 %v569, %v697
        %v826 = vadd.f32 %v570, %v698
        %v827 = vadd.f32 %v571, %v699
        %v828 = vadd.f32 %v572, %v700
        %v829 = vadd.f32 %v573, %v701
        %v830 = vadd.f32 %v574, %v702
        %v831 = vadd.f32 %v575, %v703
        %v832 = vadd.f32 %v576, %v704
        %v833 = vadd.f32 %v577, %v705
        %v834 = vadd.f32 %v578, %v706
        %v835 = vadd.f32 %v579, %v707
        %v836 = vadd.f32 %v580, %v708
        %v837 = vadd.f32 %v581, %v709
        %v838 = vadd.f32 %v582, %v710
        %v839 = vadd.f32 %v583, %v711
        %v840 = vadd.f32 %v584, %v712
        %v841 = vadd.f32 %v585, %v713
        %v842 = vadd.f32 %v586, %v714
        %v843 = vadd.f32 %v587, %v715
        %v844 = vadd.f32 %v588, %v716
        %v845 = vadd.f32 %v589, %v717
        %v846 = vadd.f32 %v590, %v718
        %v847 = vadd.f32 %v591, %v719
        %v848 = vadd.f32 %v592, %v720
        %v849 = vadd.f32 %v593, %v721
        %v850 = vadd.f32 %v594, %v722
        %v851 = vadd.f32 %v595, %v723
        %v852 = vadd.f32 %v596, %v724
        %v853 = vadd.f32 %v597, %v725
        %v854 = vadd.f32 %v598, %v726
        %v855 = vadd.f32 %v599, %v727
        %v856 = vadd.f32 %v600, %v728
        %v857 = vadd.f32 %v601, %v729
        %v858 = vadd.f32 %v602, %v730
        %v859 = vadd.f32 %v603, %v731
        %v860 = vadd.f32 %v604, %v732
        %v861 = vadd.f32 %v605, %v733
        %v862 = vadd.f32 %v606, %v734
        %v863 = vadd.f32 %v607, %v735
        %v864 = vadd.f32 %v608, %v736
        %v865 = vadd.f32 %v609, %v737
        %v866 = vadd.f32 %v610, %v738
        %v867 = vadd.f32 %v611, %v739
        %v868 = vadd.f32 %v612, %v740
        %v869 = vadd.f32 %v613, %v741
        %v870 = vadd.f32 %v614, %v742
        %v871 = vadd.f32 %v615, %v743
        %v872 = vadd.f32 %v616, %v744
        %v873 = vadd.f32 %v617, %v745
        %v874 = vadd.f32 %v618, %v746
        %v875 = vadd.f32 %v619, %v747
        %v876 = vadd.f32 %v620, %v748
        %v877 = vadd.f32 %v621, %v749
        %v878 = vadd.f32 %v622, %v750
        %v879 = vadd.f32 %v623, %v751
        %v880 = vadd.f32 %v624, %v752
        %v881 = vadd.f32 %v625, %v753
        %v882 = vadd.f32 %v626, %v754
        %v883 = vadd.f32 %v627, %v755
        %v884 = vadd.f32 %v628, %v756
        %v885 = vadd.f32 %v629, %v757
        %v886 = vadd.f32 %v630, %v758
        %v887 = vadd.f32 %v631, %v759
        %v888 = vadd.f32 %v632, %v760
        %v889 = vadd.f32 %v633, %v761
        %v890 = vadd.f32 %v634, %v762
        %v891 = vadd.f32 %v635, %v763
        %v892 = vadd.f32 %v636, %v764
        %v893 = vadd.f32 %v637, %v765
        %v894 = vadd.f32 %v638, %v766
        %v895 = vadd.f32 %v639, %v767
        %v896 = vadd.f32 %v640, %v768
        %v897 = vadd.f32 %v641, %v769
        %v898 = vadd.f32 %v642, %v770
        %v899 = vadd.f32 %v643, %v771
        %v900 = vadd.f32 %v644, %v772
        %v901 = vadd.f32 %v645, %v773
        %v902 = vadd.f32 %v646, %v774
        %v903 = vadd.f32 %v647, %v775
        %v904 = vadd.f32 %v648, %v776
        %v905 = vadd.f32 %v649, %v777
        %v906 = vadd.f32 %v650, %v778
        %v907 = vadd.f32 %v651, %v779
        %v908 = vadd.f32 %v652, %v780
        %v909 = vadd.f32 %v653, %v781
        %v910 = vadd.f32 %v654, %v782
        %v911 = vadd.f32 %v655, %v783
        %v912 = vadd.f32 %v656, %v784
        %v913 = vadd.f32 %v657, %v785
        %v914 = vadd.f32 %v658, %v786
        %v915 = vadd.f32 %v659, %v787
        %v916 = vadd.f32 %v660, %v788
        %v917 = vadd.f32 %v661, %v789
        %v918 = vadd.f32 %v662, %v790
        %919 = vst [vmem:[%s274] sm:$0xff] %v791
        %920 = vst [vmem:[%s274 + $0x8] sm:$0xff] %v792
        %921 = vst [vmem:[%s274 + $0x10] sm:$0xff] %v793
        %922 = vst [vmem:[%s274 + $0x18] sm:$0xff] %v794
        %923 = vst [vmem:[%s274 + $0x20] sm:$0xff] %v795
        %924 = vst [vmem:[%s274 + $0x28] sm:$0xff] %v796
        %925 = vst [vmem:[%s274 + $0x30] sm:$0xff] %v797
        %926 = vst [vmem:[%s274 + $0x38] sm:$0xff] %v798
        %927 = vst [vmem:[%s274 + $0x40] sm:$0xff] %v799
        %928 = vst [vmem:[%s274 + $0x48] sm:$0xff] %v800
        %929 = vst [vmem:[%s274 + $0x50] sm:$0xff] %v801
        %930 = vst [vmem:[%s274 + $0x58] sm:$0xff] %v802
        %931 = vst [vmem:[%s274 + $0x60] sm:$0xff] %v803
        %932 = vst [vmem:[%s274 + $0x68] sm:$0xff] %v804
        %933 = vst [vmem:[%s274 + $0x70] sm:$0xff] %v805
        %934 = vst [vmem:[%s274 + $0x78] sm:$0xff] %v806
        %935 = vst [vmem:[%s274 + $0x80] sm:$0xff] %v807
        %936 = vst [vmem:[%s274 + $0x88] sm:$0xff] %v808
        %937 = vst [vmem:[%s274 + $0x90] sm:$0xff] %v809
        %938 = vst [vmem:[%s274 + $0x98] sm:$0xff] %v810
        %939 = vst [vmem:[%s274 + $0xa0] sm:$0xff] %v811
        %940 = vst [vmem:[%s274 + $0xa8] sm:$0xff] %v812
        %941 = vst [vmem:[%s274 + $0xb0] sm:$0xff] %v813
        %942 = vst [vmem:[%s274 + $0xb8] sm:$0xff] %v814
        %943 = vst [vmem:[%s274 + $0xc0] sm:$0xff] %v815
        %944 = vst [vmem:[%s274 + $0xc8] sm:$0xff] %v816
        %945 = vst [vmem:[%s274 + $0xd0] sm:$0xff] %v817
        %946 = vst [vmem:[%s274 + $0xd8] sm:$0xff] %v818
        %947 = vst [vmem:[%s274 + $0xe0] sm:$0xff] %v819
        %948 = vst [vmem:[%s274 + $0xe8] sm:$0xff] %v820
        %949 = vst [vmem:[%s274 + $0xf0] sm:$0xff] %v821
        %950 = vst [vmem:[%s274 + $0xf8] sm:$0xff] %v822
        %951 = vst [vmem:[%s274 + $0x100] sm:$0xff] %v823
        %952 = vst [vmem:[%s274 + $0x108] sm:$0xff] %v824
        %953 = vst [vmem:[%s274 + $0x110] sm:$0xff] %v825
        %954 = vst [vmem:[%s274 + $0x118] sm:$0xff] %v826
        %955 = vst [vmem:[%s274 + $0x120] sm:$0xff] %v827
        %956 = vst [vmem:[%s274 + $0x128] sm:$0xff] %v828
        %957 = vst [vmem:[%s274 + $0x130] sm:$0xff] %v829
        %958 = vst [vmem:[%s274 + $0x138] sm:$0xff] %v830
        %959 = vst [vmem:[%s274 + $0x140] sm:$0xff] %v831
        %960 = vst [vmem:[%s274 + $0x148] sm:$0xff] %v832
        %961 = vst [vmem:[%s274 + $0x150] sm:$0xff] %v833
        %962 = vst [vmem:[%s274 + $0x158] sm:$0xff] %v834
        %963 = vst [vmem:[%s274 + $0x160] sm:$0xff] %v835
        %964 = vst [vmem:[%s274 + $0x168] sm:$0xff] %v836
        %965 = vst [vmem:[%s274 + $0x170] sm:$0xff] %v837
        %966 = vst [vmem:[%s274 + $0x178] sm:$0xff] %v838
        %967 = vst [vmem:[%s274 + $0x180] sm:$0xff] %v839
        %968 = vst [vmem:[%s274 + $0x188] sm:$0xff] %v840
        %969 = vst [vmem:[%s274 + $0x190] sm:$0xff] %v841
        %970 = vst [vmem:[%s274 + $0x198] sm:$0xff] %v842
        %971 = vst [vmem:[%s274 + $0x1a0] sm:$0xff] %v843
        %972 = vst [vmem:[%s274 + $0x1a8] sm:$0xff] %v844
        %973 = vst [vmem:[%s274 + $0x1b0] sm:$0xff] %v845
        %974 = vst [vmem:[%s274 + $0x1b8] sm:$0xff] %v846
        %975 = vst [vmem:[%s274 + $0x1c0] sm:$0xff] %v847
        %976 = vst [vmem:[%s274 + $0x1c8] sm:$0xff] %v848
        %977 = vst [vmem:[%s274 + $0x1d0] sm:$0xff] %v849
        %978 = vst [vmem:[%s274 + $0x1d8] sm:$0xff] %v850
        %979 = vst [vmem:[%s274 + $0x1e0] sm:$0xff] %v851
        %980 = vst [vmem:[%s274 + $0x1e8] sm:$0xff] %v852
        %981 = vst [vmem:[%s274 + $0x1f0] sm:$0xff] %v853
        %982 = vst [vmem:[%s274 + $0x1f8] sm:$0xff] %v854
        %983 = vst [vmem:[%s274 + $0x200] sm:$0xff] %v855
        %984 = vst [vmem:[%s274 + $0x208] sm:$0xff] %v856
        %985 = vst [vmem:[%s274 + $0x210] sm:$0xff] %v857
        %986 = vst [vmem:[%s274 + $0x218] sm:$0xff] %v858
        %987 = vst [vmem:[%s274 + $0x220] sm:$0xff] %v859
        %988 = vst [vmem:[%s274 + $0x228] sm:$0xff] %v860
        %989 = vst [vmem:[%s274 + $0x230] sm:$0xff] %v861
        %990 = vst [vmem:[%s274 + $0x238] sm:$0xff] %v862
        %991 = vst [vmem:[%s274 + $0x240] sm:$0xff] %v863
        %992 = vst [vmem:[%s274 + $0x248] sm:$0xff] %v864
        %993 = vst [vmem:[%s274 + $0x250] sm:$0xff] %v865
        %994 = vst [vmem:[%s274 + $0x258] sm:$0xff] %v866
        %995 = vst [vmem:[%s274 + $0x260] sm:$0xff] %v867
        %996 = vst [vmem:[%s274 + $0x268] sm:$0xff] %v868
        %997 = vst [vmem:[%s274 + $0x270] sm:$0xff] %v869
        %998 = vst [vmem:[%s274 + $0x278] sm:$0xff] %v870
        %999 = vst [vmem:[%s274 + $0x280] sm:$0xff] %v871
        %1000 = vst [vmem:[%s274 + $0x288] sm:$0xff] %v872
        %1001 = vst [vmem:[%s274 + $0x290] sm:$0xff] %v873
        %1002 = vst [vmem:[%s274 + $0x298] sm:$0xff] %v874
        %1003 = vst [vmem:[%s274 + $0x2a0] sm:$0xff] %v875
        %1004 = vst [vmem:[%s274 + $0x2a8] sm:$0xff] %v876
        %1005 = vst [vmem:[%s274 + $0x2b0] sm:$0xff] %v877
        %1006 = vst [vmem:[%s274 + $0x2b8] sm:$0xff] %v878
        %1007 = vst [vmem:[%s274 + $0x2c0] sm:$0xff] %v879
        %1008 = vst [vmem:[%s274 + $0x2c8] sm:$0xff] %v880
        %1009 = vst [vmem:[%s274 + $0x2d0] sm:$0xff] %v881
        %1010 = vst [vmem:[%s274 + $0x2d8] sm:$0xff] %v882
        %1011 = vst [vmem:[%s274 + $0x2e0] sm:$0xff] %v883
        %1012 = vst [vmem:[%s274 + $0x2e8] sm:$0xff] %v884
        %1013 = vst [vmem:[%s274 + $0x2f0] sm:$0xff] %v885
        %1014 = vst [vmem:[%s274 + $0x2f8] sm:$0xff] %v886
        %1015 = vst [vmem:[%s274 + $0x300] sm:$0xff] %v887
        %1016 = vst [vmem:[%s274 + $0x308] sm:$0xff] %v888
        %1017 = vst [vmem:[%s274 + $0x310] sm:$0xff] %v889
        %1018 = vst [vmem:[%s274 + $0x318] sm:$0xff] %v890
        %1019 = vst [vmem:[%s274 + $0x320] sm:$0xff] %v891
        %1020 = vst [vmem:[%s274 + $0x328] sm:$0xff] %v892
        %1021 = vst [vmem:[%s274 + $0x330] sm:$0xff] %v893
        %1022 = vst [vmem:[%s274 + $0x338] sm:$0xff] %v894
        %1023 = vst [vmem:[%s274 + $0x340] sm:$0xff] %v895
        %1024 = vst [vmem:[%s274 + $0x348] sm:$0xff] %v896
        %1025 = vst [vmem:[%s274 + $0x350] sm:$0xff] %v897
        %1026 = vst [vmem:[%s274 + $0x358] sm:$0xff] %v898
        %1027 = vst [vmem:[%s274 + $0x360] sm:$0xff] %v899
        %1028 = vst [vmem:[%s274 + $0x368] sm:$0xff] %v900
        %1029 = vst [vmem:[%s274 + $0x370] sm:$0xff] %v901
        %1030 = vst [vmem:[%s274 + $0x378] sm:$0xff] %v902
        %1031 = vst [vmem:[%s274 + $0x380] sm:$0xff] %v903
        %1032 = vst [vmem:[%s274 + $0x388] sm:$0xff] %v904
        %1033 = vst [vmem:[%s274 + $0x390] sm:$0xff] %v905
        %1034 = vst [vmem:[%s274 + $0x398] sm:$0xff] %v906
        %1035 = vst [vmem:[%s274 + $0x3a0] sm:$0xff] %v907
        %1036 = vst [vmem:[%s274 + $0x3a8] sm:$0xff] %v908
        %1037 = vst [vmem:[%s274 + $0x3b0] sm:$0xff] %v909
        %1038 = vst [vmem:[%s274 + $0x3b8] sm:$0xff] %v910
        %1039 = vst [vmem:[%s274 + $0x3c0] sm:$0xff] %v911
        %1040 = vst [vmem:[%s274 + $0x3c8] sm:$0xff] %v912
        %1041 = vst [vmem:[%s274 + $0x3d0] sm:$0xff] %v913
        %1042 = vst [vmem:[%s274 + $0x3d8] sm:$0xff] %v914
        %1043 = vst [vmem:[%s274 + $0x3e0] sm:$0xff] %v915
        %1044 = vst [vmem:[%s274 + $0x3e8] sm:$0xff] %v916
        %1045 = vst [vmem:[%s274 + $0x3f0] sm:$0xff] %v917
        %1046 = vst [vmem:[%s274 + $0x3f8] sm:$0xff] %v918
        %s1047 = sand.u32 %s109, 1
        %s1048 = scalar_lea.sflag [#allocation4], %s1047
        %s1049 = sand.u32 %s109, 1
        %s1050 = smul.addr %s1049, 1024
        %s1051 = scalar_lea.vmem [#allocation8], %s1050
        // Predicated region
        $region45: #{tpu_custom_call.1} parent=31 // pred_check
          %p1052 = pneg %p119
        $region46: #{tpu_custom_call.1} parent=31 // pred_check_branch
          %1054 = sbr.rel (%p1052) target = $region48
        $region47: #{tpu_custom_call.1} parent=31 // pred_region
          %s1055 = smul.u32 16, %s23
          %1057 = vsyncadd %s1048, 0
          %s1058 = smul.addr %s1055, 8
          %s1059 = smul.addr %s1058, 8
          %s1060 = scalar_lea.hbm %s3, %s1059
          %s1061 = sshll.u32 %s1051, 4
          %s1062 = int_to_ptr.vmem [resolvable:$true] %s1061
          %s1063 = sshll.u32 %s1060, 4
          %s1064 = int_to_ptr.hbm [resolvable:$true] %s1063
          %1069 = dma.vmem_to_hbm [thread:$0]  %s1062, 16384, %s1064, %s1048, 1024, 1024, 64
        $region48: #{tpu_custom_call.1} parent=31 // pred_fallthru
          _
      $region32: #{tpu_custom_call.1} parent=5 // pred_fallthru
        _
      %p1070 = scmp.le.s32.totalorder 2, %s18
      // Predicated region
      $region49: #{tpu_custom_call.1} parent=5 // pred_check
        %p1071 = pneg %p1070
      $region50: #{tpu_custom_call.1} parent=5 // pred_check_branch
        %1073 = sbr.rel (%p1071) target = $region52
      $region51: #{tpu_custom_call.1} parent=5 // pred_region
        %s1074 = ssub.s32 %s18, 2
        // Predicated region
        $region53: #{tpu_custom_call.1} parent=51 // pred_check
          %p1075 = pneg %p125
        $region54: #{tpu_custom_call.1} parent=51 // pred_check_branch
          %1077 = sbr.rel (%p1075) target = $region56
        $region55: #{tpu_custom_call.1} parent=51 // pred_region
          %s1078 = sand.u32 %s110, 1
          %s1079 = scalar_lea.sflag [#allocation4], %s1078
          %s1080 = sand.u32 %s110, 1
          %s1081 = smul.addr %s1080, 1024
          %s1082 = scalar_lea.vmem [#allocation8], %s1081
          %1084 = dma.done %s1079, 16384
        $region56: #{tpu_custom_call.1} parent=51 // pred_fallthru
          _
      $region52: #{tpu_custom_call.1} parent=5 // pred_fallthru
        _
    $region6: #{tpu_custom_call.1} parent=1 // loop_footer
      %s22 = sadd.s32 1, %s18
    $region7: #{tpu_custom_call.1} parent=1 // loop_footer_branch
      %17 = sbr.rel target = $region3
    $region8: #{tpu_custom_call.1} parent=1 // loop_exit
      _
    %1085 = vsyncpa [#allocation3], 1
    %s1086 = scalar_lea.sflag [#allocation3], 1
    %1087 = vsyncpa %s1086, 1
    %1088 = vsyncpa [#allocation6], 1
    %s1089 = scalar_lea.sflag [#allocation6], 1
    %1090 = vsyncpa %s1089, 1
    %1091 = vsyncpa [#allocation4], 1
    %s1092 = scalar_lea.sflag [#allocation4], 1
    %1093 = vsyncpa %s1092, 1

</llo_original>
